<compile_context>
chip_gen: v7x
topology: tpu7x:2x2x1
jax: 0.10.0
libtpu: 0.0.40
codegen_flags: <defaults>
</compile_context>

<pallas_src>
import jax
import jax.numpy as jnp
from jax.experimental import pallas as pl
from jax.experimental.pallas import tpu as pltpu


def _identity_kernel(x_ref, o_ref):
    # Pure pass-through on the current VMEM tile.
    o_ref[...] = x_ref[...]


_LANE = 128
_MAX_COLS = 4096
_TARGET_BLOCK_BYTES = 4 * 1024 * 1024  # ~4 MiB/block; pipeline holds ~4x this.


def _lane_dense_cols(n: int) -> int:
    """Largest multiple of 128 that divides n (capped at _MAX_COLS); 0 if none."""
    best = 0
    c = _LANE
    cap = min(n, _MAX_COLS)
    while c <= cap:
        if n % c == 0:
            best = c
        c += _LANE
    return best


def _pick_tile_rows(rows: int, cols: int, itemsize: int) -> int:
    """Rows per block: ~_TARGET_BLOCK_BYTES, sublane-packing friendly."""
    tr = max(1, _TARGET_BLOCK_BYTES // max(1, cols * itemsize))
    tr = min(tr, rows)
    if tr < rows:
        # Partial-extent block: keep rows a multiple of 32 sublanes so f32 /
        # bf16 / int8 packing all stay unmasked (fall back to 8 if tiny).
        if tr >= 32:
            tr = (tr // 32) * 32
        elif tr >= 8:
            tr = (tr // 8) * 8
        else:
            tr = rows  # too small to tile cleanly; take the full extent
    if tr == rows and rows >= 16:
        # Whole slab fits in one block: split it so the "parallel" grid axis
        # has >=2 steps and v7x's two TensorCores can share the copy.
        half = (rows + 1) // 2
        tr = max(8, (half // 8) * 8)
    return tr


def _copy_2d(x2: jax.Array) -> jax.Array:
    rows, cols = x2.shape
    itemsize = jnp.dtype(x2.dtype).itemsize
    tr = _pick_tile_rows(rows, cols, itemsize)
    grid = (pl.cdiv(rows, tr),)
    nbytes = rows * cols * itemsize

    return pl.pallas_call(
        _identity_kernel,
        out_shape=jax.ShapeDtypeStruct((rows, cols), x2.dtype),
        grid_spec=pl.GridSpec(
            grid=grid,
            in_specs=[pl.BlockSpec((tr, cols), lambda i: (i, 0))],
            out_specs=pl.BlockSpec((tr, cols), lambda i: (i, 0)),
        ),
        # Reuse the input HBM buffer for the output when it is donatable:
        # removes the second allocation / halves HBM traffic for the memcpy.
        input_output_aliases={0: 0},
        cost_estimate=pl.CostEstimate(
            flops=0, transcendentals=0, bytes_accessed=2 * nbytes
        ),
        compiler_params=pltpu.CompilerParams(
            dimension_semantics=("parallel",),
            vmem_limit_bytes=32 * 1024 * 1024,
        ),
    )(x2)


def identity(x: jax.Array) -> jax.Array:
    """Pallas identity: y = x, shape and dtype preserved.

    NOTE: the true optimum for Identity is to return `x` with no kernel at
    all; this wrapper runs the (aliased, lane-dense, big-tile) copy kernel to
    exercise the Pallas path.
    """
    if x.size == 0:
        return x  # nothing to copy

    orig_shape = x.shape
    n = x.size

    cols = _lane_dense_cols(n)
    if cols > 0:
        # Lane-dense slab: last dim a multiple of 128 -> unmasked full-width
        # vector stores and wide, contiguous DMA strips.
        x2 = x.reshape(n // cols, cols)
    elif x.ndim >= 2:
        # Fallback: keep the original last dim as a full-extent block
        # (valid BlockSpec; no padding, no tail masking needed).
        x2 = x.reshape(-1, x.shape[-1])
    else:
        x2 = x.reshape(1, n)

    out = _copy_2d(x2)
    return out.reshape(orig_shape)


if __name__ == "__main__":
    key = jax.random.PRNGKey(0)

    # Example input consistent with a typical NCHW activation tensor.
    x = jax.random.normal(key, (2, 4, 16, 16), dtype=jnp.float32)
    y = identity(x)
    jax.block_until_ready(y)
    assert y.shape == x.shape
    assert y.dtype == x.dtype
    assert jnp.array_equal(y, x)

    # Ragged element count (not a multiple of 128) exercises the fallback path.
    x_ragged = jnp.arange(37, dtype=jnp.int32)
    y_ragged = identity(x_ragged)
    jax.block_until_ready(y_ragged)
    assert y_ragged.shape == x_ragged.shape
    assert y_ragged.dtype == x_ragged.dtype
    assert jnp.array_equal(y_ragged, x_ragged)

    print("KERNEL_OK")
</pallas_src>

<mosaic_0001>
module attributes {stable_mosaic.version = 11 : i64} {
  func.func @_identity_kernel(%arg0: i32, %arg1: memref<1x2048xf32, #tpu.memory_space<vmem>>, %arg2: memref<1x2048xf32, #tpu.memory_space<vmem>>) attributes {dimension_semantics = [#tpu.dimension_semantics<parallel>], iteration_bounds = array<i64: 1>, scalar_prefetch = 0 : i64, scratch_operands = 0 : i64, tpu.core_type = #tpu.core_type<tc>, window_params = [{transform_indices = @transform_0, window_bounds = array<i64: 1, 2048>}, {transform_indices = @transform_1, window_bounds = array<i64: 1, 2048>}]} {
    %c0 = arith.constant 0 : index
    %c0_0 = arith.constant 0 : index
    %0 = vector.load %arg1[%c0, %c0_0] : memref<1x2048xf32, #tpu.memory_space<vmem>>, vector<1x2048xf32>
    %c0_1 = arith.constant 0 : index
    %c0_2 = arith.constant 0 : index
    %1 = vector.load %arg2[%c0_1, %c0_2] : memref<1x2048xf32, #tpu.memory_space<vmem>>, vector<1x2048xf32>
    tpu.vector_store %arg2[%c0_1, %c0_2], %0 {strides = array<i32>} : memref<1x2048xf32, #tpu.memory_space<vmem>>, vector<1x2048xf32>,
    return
  }
  func.func @transform_0(%arg0: i32) -> (i32, i32) {
    %c0_i32 = arith.constant 0 : i32
    %c0_i32_0 = arith.constant 0 : i32
    return %arg0, %c0_i32 : i32, i32
  }
  func.func @transform_1(%arg0: i32) -> (i32, i32) {
    %c0_i32 = arith.constant 0 : i32
    %c0_i32_0 = arith.constant 0 : i32
    return %arg0, %c0_i32 : i32, i32
  }
}

</mosaic_0001>

<llo_original>
// kernel: tpu_custom_call.1
$region0: #{tpu_custom_call.1}
  #allocation0 [shape = 'u32[]', space=smem, size = 0x4, offset = 0x4, fixed_abs, tag = 'smem constant byte address 0x4 - core index']
  #allocation1 [shape = 'u32[144,128]{1,0:T(1,128)}', space=vmem, size = 0x12000, scoped, tag = 'internal scratch']
  %s0 = inlined_call_operand.hbm [shape: f32[1,2048], index: 0, kind: input, shape index: {}, may-alias: {0,1}]
  %s1 = inlined_call_operand.hbm [shape: f32[1,2048], index: 1, kind: output, shape index: {}, may-alias: {0,1}]
  %s2 = sld [smem:[#allocation0]]
  $region18: #{tpu_custom_call.1} parent=0
    _
  %s4 = ssub.s32 1, %s2
  %s5 = scalar_select 0, %s4, %s2
  $region1: #{tpu_custom_call.1} parent=0
    #allocation2 [shape = 'u8[8192]{0}', space=vmem, size = 0x2000, scoped, tag = 'input window, operand 0, single buffered']
    #allocation3 [shape = 's32[1]{0}', space=sflag, size = 0x4, scoped, tag = 'scoped memory for tpu_custom_call.1']
    #allocation4 [shape = 's32[1]{0}', space=sflag, size = 0x4, scoped, tag = 'scoped memory for tpu_custom_call.1']
    #allocation5 [shape = 'u8[8192]{0}', space=vmem, size = 0x2000, scoped, tag = 'output window, operand 0, single buffered']
    %6 = vsyncpa [#allocation3], 0
    %7 = vsyncpa [#allocation4], 0
    // Predicated region
    $region2: #{tpu_custom_call.1} parent=1 // pred_check
      _
    $region3: #{tpu_custom_call.1} parent=1 // pred_check_branch
      %9 = sbr.rel (0) target = $region5
    $region4: #{tpu_custom_call.1} parent=1 // pred_region
      %s11 = ssub.s32 256, 256
      %12 = vsyncadd [#allocation3], %s11
      %s14 = sshll.u32 [#allocation2], 4
      %s15 = int_to_ptr.vmem [resolvable:$true] %s14
      %17 = dma.hbm_to_vmem [thread:$0]  %s0, 256, %s15, [#allocation3]
    $region5: #{tpu_custom_call.1} parent=1 // pred_fallthru
      _
    // Predicated region
    $region6: #{tpu_custom_call.1} parent=1 // pred_check
      _
    $region7: #{tpu_custom_call.1} parent=1 // pred_check_branch
      %19 = sbr.rel (0) target = $region9
    $region8: #{tpu_custom_call.1} parent=1 // pred_region
      %20 = dma.done [#allocation3], 256
    $region9: #{tpu_custom_call.1} parent=1 // pred_fallthru
      _
    %v21 = vld [vmem:[#allocation2] sm:$0xff]
    %v22 = vld [vmem:[#allocation2 + $0x8] sm:$0xff]
    %23 = vst [vmem:[#allocation5] sm:$0xff] %v21
    %24 = vst [vmem:[#allocation5 + $0x8] sm:$0xff] %v22
    // Predicated region
    $region10: #{tpu_custom_call.1} parent=1 // pred_check
      _
    $region11: #{tpu_custom_call.1} parent=1 // pred_check_branch
      %26 = sbr.rel (0) target = $region13
    $region12: #{tpu_custom_call.1} parent=1 // pred_region
      %s28 = ssub.s32 256, 256
      %29 = vsyncadd [#allocation4], %s28
      %s31 = sshll.u32 [#allocation5], 4
      %s32 = int_to_ptr.vmem [resolvable:$true] %s31
      %34 = dma.vmem_to_hbm [thread:$0]  %s32, 256, %s1, [#allocation4]
    $region13: #{tpu_custom_call.1} parent=1 // pred_fallthru
      _
    // Predicated region
    $region14: #{tpu_custom_call.1} parent=1 // pred_check
      _
    $region15: #{tpu_custom_call.1} parent=1 // pred_check_branch
      %36 = sbr.rel (0) target = $region17
    $region16: #{tpu_custom_call.1} parent=1 // pred_region
      %37 = dma.done [#allocation4], 256
    $region17: #{tpu_custom_call.1} parent=1 // pred_fallthru
      _
    %38 = vsyncpa [#allocation3], 1
    %39 = vsyncpa [#allocation4], 1

</llo_original>
